<compile_context>
chip_gen: v6e
topology: v6e:2x2x1
jax: 0.10.0
libtpu: 0.0.40
codegen_flags: <defaults>
</compile_context>

<pallas_src>
import functools

import numpy as np
import jax
import jax.numpy as jnp
from jax.experimental import pallas as pl
from jax.experimental.pallas import tpu as pltpu

EPS = 1e-5


def _round_up(x, m):
    return (x + m - 1) // m * m


# ---------------------------------------------------------------------------
# Kernel: one grid step = one image.  Everything stays in vregs.
# ---------------------------------------------------------------------------
def _down_kernel(x_ref, b1_ref, s1_ref, t1_ref, b2_ref, s2_ref, t2_ref, o_ref):
    # x_ref : (4, 1, Ho, Wo*Cin)  -- the 4 (ph, pw) offsets of each 2x2 window
    # b1_ref: (3, Wo*Cin, NO1)    -- banded conv1 weights, one slab per kh tap
    # b2_ref: (3, NO1,    NO2)    -- banded conv2 weights
    # s*/t* : (1, NO*)            -- folded (conv bias + BatchNorm) scale/shift
    # o_ref : (1, Ho, NO2)        -- lane-dense (128-multiple) output rows
    Ho = x_ref.shape[2]

    # ---------------- MaxPool2d(2): 3 VPU maxes ----------------
    pooled = jnp.maximum(jnp.maximum(x_ref[0, 0], x_ref[1, 0]),
                         jnp.maximum(x_ref[2, 0], x_ref[3, 0]))   # (Ho, Wo*Cin)

    # Hoisted per-row masks for the kh = 0 / 2 taps (SAME padding in H).
    row = jax.lax.broadcasted_iota(jnp.int32, (Ho, 1), 0)
    not_first = row > 0
    not_last = row < Ho - 1

    # ---------------- conv3x3(SAME) + BN + ReLU ----------------
    # kw taps and W zero-padding are folded into the banded weight slabs
    # w_ref[kh]; kh taps are in-vreg sublane rolls + row masks (no scratch).
    def conv_bn_relu(act, w_ref, s_ref, t_ref):
        # centre tap initialises the accumulator (no zero-fill + add)
        acc = jnp.dot(act, w_ref[1], preferred_element_type=jnp.float32)
        # kh = 0 tap reads row ho-1: rotate rows down by 1, zero the first row
        up = jnp.where(not_first, pltpu.roll(act, shift=1, axis=0), 0.0)
        acc = acc + jnp.dot(up, w_ref[0], preferred_element_type=jnp.float32)
        # kh = 2 tap reads row ho+1: rotate rows up by 1 (== Ho-1), zero last row
        dn = jnp.where(not_last, pltpu.roll(act, shift=Ho - 1, axis=0), 0.0)
        acc = acc + jnp.dot(dn, w_ref[2], preferred_element_type=jnp.float32)
        # folded conv bias + BatchNorm (inference) + ReLU: one fused VPU pass
        return jnp.maximum(acc * s_ref[...] + t_ref[...], 0.0)

    h = conv_bn_relu(pooled, b1_ref, s1_ref, t1_ref)      # (Ho, NO1)
    out = conv_bn_relu(h, b2_ref, s2_ref, t2_ref)         # (Ho, NO2)
    o_ref[0] = out.astype(o_ref.dtype)


# ---------------------------------------------------------------------------
# One-time host-side parameter preprocessing (kept off the forward path).
# ---------------------------------------------------------------------------
def _banded_weights(w_hwio, wo, n_in_pad, n_out_pad):
    """Fold the kw taps + W zero-padding of a 3x3 SAME conv into 3 banded
    matrices B[kh] of shape (n_in_pad, n_out_pad):
        B[kh, jp*C + c, j*Co + o] = w[kh, jp - j + 1, c, o]
    for jp in {j-1, j, j+1} intersect [0, wo); every other entry (including
    the lane-padding rows/columns) is zero.  Host-side numpy, one time."""
    _, _, C, Co = w_hwio.shape
    w = np.asarray(w_hwio, np.float32)
    B = np.zeros((3, n_in_pad, n_out_pad), np.float32)
    for kh in range(3):
        for kw in range(3):
            for j in range(wo):
                jp = j + kw - 1
                if 0 <= jp < wo:
                    B[kh, jp * C:(jp + 1) * C, j * Co:(j + 1) * Co] = w[kh, kw]
    return jnp.asarray(B)


def _lane_vec(vec_c, wo, n_pad):
    """Tile a per-channel vector to the (wo, c) lane layout, pad with zeros."""
    v = np.tile(np.asarray(vec_c, np.float32), wo)
    out = np.zeros((1, n_pad), np.float32)
    out[0, : v.shape[0]] = v
    return jnp.asarray(out)


def fold_params(params, H, W):
    """Band + pad the conv weights and fold conv-bias into the BN shift."""
    Wo = W // 2
    Cin = params["w1"].shape[2]
    Cmid = params["w1"].shape[3]
    Cout = params["w2"].shape[3]
    K1 = Wo * Cin
    NO1 = _round_up(Wo * Cmid, 128)   # lane-dense intermediate
    NO2 = _round_up(Wo * Cout, 128)   # lane-dense output

    B1 = _banded_weights(params["w1"], Wo, K1, NO1)
    B2 = _banded_weights(params["w2"], Wo, NO1, NO2)
    # (conv + b) * s + t  ==  conv * s + (b * s + t)
    s1 = _lane_vec(params["s1"], Wo, NO1)
    t1 = _lane_vec(params["b1"] * params["s1"] + params["t1"], Wo, NO1)
    s2 = _lane_vec(params["s2"], Wo, NO2)
    t2 = _lane_vec(params["b2"] * params["s2"] + params["t2"], Wo, NO2)
    return (B1, s1, t1, B2, s2, t2)


# ---------------------------------------------------------------------------
# Forward wrapper.
# ---------------------------------------------------------------------------
@functools.partial(jax.jit, static_argnames=("out_ch",))
def down_forward(x_nchw, folded, *, out_ch):
    """Pallas implementation of `down.forward` (inference BN). NCHW in/out."""
    B1, s1, t1, B2, s2, t2 = folded
    N, Cin, H, W = x_nchw.shape
    assert H % 2 == 0 and W % 2 == 0
    Ho, Wo = H // 2, W // 2
    K1 = B1.shape[1]
    NO1 = B1.shape[2]
    NO2 = B2.shape[2]
    assert K1 == Wo * Cin

    # Single layout pass (the NCHW -> channels-last transpose we need anyway),
    # splitting the 2x2 pooling window into the leading axis:
    #   x4[k, n, ho, wo*Cin + c] = x[n, c, 2*ho + k//2, 2*wo + k%2]
    x4 = x_nchw.reshape(N, Cin, Ho, 2, Wo, 2)
    x4 = jnp.transpose(x4, (3, 5, 0, 2, 4, 1))          # (2, 2, N, Ho, Wo, Cin)
    x4 = x4.reshape(4, N, Ho, K1).astype(jnp.float32)

    out = pl.pallas_call(
        _down_kernel,
        out_shape=jax.ShapeDtypeStruct((N, Ho, NO2), jnp.float32),
        grid=(N,),
        in_specs=[
            pl.BlockSpec((4, 1, Ho, K1), lambda n: (0, n, 0, 0)),
            pl.BlockSpec((3, K1, NO1), lambda n: (0, 0, 0)),   # resident weights
            pl.BlockSpec((1, NO1), lambda n: (0, 0)),
            pl.BlockSpec((1, NO1), lambda n: (0, 0)),
            pl.BlockSpec((3, NO1, NO2), lambda n: (0, 0, 0)),  # resident weights
            pl.BlockSpec((1, NO2), lambda n: (0, 0)),
            pl.BlockSpec((1, NO2), lambda n: (0, 0)),
        ],
        out_specs=pl.BlockSpec((1, Ho, NO2), lambda n: (n, 0, 0)),
        compiler_params=pltpu.CompilerParams(
            dimension_semantics=("parallel",)),
    )(x4, B1, s1, t1, B2, s2, t2)

    # Slice off the lane padding; back to the PyTorch NCHW convention.
    out = out[:, :, : Wo * out_ch].reshape(N, Ho, Wo, out_ch)
    return jnp.transpose(out, (0, 3, 1, 2))


# ---------------------------------------------------------------------------
# Synthetic parameters + pure-JAX reference for verification.
# ---------------------------------------------------------------------------
def make_params(key, in_ch, out_ch):
    """Deterministic synthetic parameters for conv1/BN1/conv2/BN2.

    BatchNorm is applied in inference mode (running_mean=0, running_var=1),
    expressed as a per-channel scale/shift.
    """
    ks = jax.random.split(key, 8)

    def bn_fold(gamma, beta, mean, var):
        scale = gamma / jnp.sqrt(var + EPS)
        shift = beta - mean * scale
        return scale, shift

    w1 = 0.1 * jax.random.normal(ks[0], (3, 3, in_ch, out_ch), jnp.float32)
    b1 = 0.1 * jax.random.normal(ks[1], (out_ch,), jnp.float32)
    g1 = 1.0 + 0.1 * jax.random.normal(ks[2], (out_ch,), jnp.float32)
    be1 = 0.1 * jax.random.normal(ks[3], (out_ch,), jnp.float32)
    s1, t1 = bn_fold(g1, be1, jnp.zeros((out_ch,)), jnp.ones((out_ch,)))

    w2 = 0.1 * jax.random.normal(ks[4], (3, 3, out_ch, out_ch), jnp.float32)
    b2 = 0.1 * jax.random.normal(ks[5], (out_ch,), jnp.float32)
    g2 = 1.0 + 0.1 * jax.random.normal(ks[6], (out_ch,), jnp.float32)
    be2 = 0.1 * jax.random.normal(ks[7], (out_ch,), jnp.float32)
    s2, t2 = bn_fold(g2, be2, jnp.zeros((out_ch,)), jnp.ones((out_ch,)))

    return dict(w1=w1, b1=b1, s1=s1, t1=t1, w2=w2, b2=b2, s2=s2, t2=t2)


def _ref_forward(x_nchw, p):
    """Pure-JAX reference (same semantics) for verification."""
    x = jnp.transpose(x_nchw, (0, 2, 3, 1))
    x = jax.lax.reduce_window(x, -jnp.inf, jax.lax.max,
                              (1, 2, 2, 1), (1, 2, 2, 1), "VALID")

    def conv_bn_relu(h, w, b, s, t):
        h = jax.lax.conv_general_dilated(
            h, w, (1, 1), "SAME", dimension_numbers=("NHWC", "HWIO", "NHWC"))
        h = h + b.reshape(1, 1, 1, -1)
        h = h * s.reshape(1, 1, 1, -1) + t.reshape(1, 1, 1, -1)
        return jnp.maximum(h, 0.0)

    h = conv_bn_relu(x, p["w1"], p["b1"], p["s1"], p["t1"])
    h = conv_bn_relu(h, p["w2"], p["b2"], p["s2"], p["t2"])
    return jnp.transpose(h, (0, 3, 1, 2))


if __name__ == "__main__":
    key = jax.random.PRNGKey(0)
    k_x, k_p = jax.random.split(key)

    N, in_ch, out_ch, H, W = 2, 4, 8, 16, 16
    x = jax.random.normal(k_x, (N, in_ch, H, W), jnp.float32)   # NCHW like PyTorch
    params = make_params(k_p, in_ch, out_ch)
    folded = fold_params(params, H, W)                          # one-time prep

    y = jax.block_until_ready(down_forward(x, folded, out_ch=out_ch))
    y_ref = jax.block_until_ready(_ref_forward(x, params))

    assert y.shape == (N, out_ch, H // 2, W // 2), y.shape
    assert jnp.allclose(y, y_ref, rtol=1e-4, atol=1e-4), \
        float(jnp.max(jnp.abs(y - y_ref)))

    print("KERNEL_OK")
</pallas_src>

<mosaic_0001>
module attributes {stable_mosaic.version = 11 : i64} {
  func.func @_down_kernel(%arg0: i32, %arg1: memref<4x1x8x32xf32, #tpu.memory_space<vmem>>, %arg2: memref<3x32x128xf32, #tpu.memory_space<vmem>>, %arg3: memref<1x128xf32, #tpu.memory_space<vmem>>, %arg4: memref<1x128xf32, #tpu.memory_space<vmem>>, %arg5: memref<3x128x128xf32, #tpu.memory_space<vmem>>, %arg6: memref<1x128xf32, #tpu.memory_space<vmem>>, %arg7: memref<1x128xf32, #tpu.memory_space<vmem>>, %arg8: memref<1x8x128xf32, #tpu.memory_space<vmem>>) attributes {dimension_semantics = [#tpu.dimension_semantics<parallel>], iteration_bounds = array<i64: 2>, scalar_prefetch = 0 : i64, scratch_operands = 0 : i64, tpu.core_type = #tpu.core_type<tc>, window_params = [{transform_indices = @transform_0, window_bounds = array<i64: 4, 1, 8, 32>}, {pipeline_mode = #tpu.pipeline_mode<synchronous>, transform_indices = @transform_1, window_bounds = array<i64: 3, 32, 128>}, {pipeline_mode = #tpu.pipeline_mode<synchronous>, transform_indices = @transform_2, window_bounds = array<i64: 1, 128>}, {pipeline_mode = #tpu.pipeline_mode<synchronous>, transform_indices = @transform_3, window_bounds = array<i64: 1, 128>}, {pipeline_mode = #tpu.pipeline_mode<synchronous>, transform_indices = @transform_4, window_bounds = array<i64: 3, 128, 128>}, {pipeline_mode = #tpu.pipeline_mode<synchronous>, transform_indices = @transform_5, window_bounds = array<i64: 1, 128>}, {pipeline_mode = #tpu.pipeline_mode<synchronous>, transform_indices = @transform_6, window_bounds = array<i64: 1, 128>}, {transform_indices = @transform_7, window_bounds = array<i64: 1, 8, 128>}]} {
    %c0 = arith.constant 0 : index
    %c0_0 = arith.constant 0 : index
    %c0_1 = arith.constant 0 : index
    %c0_2 = arith.constant 0 : index
    %0 = vector.load %arg1[%c0, %c0_0, %c0_1, %c0_2] : memref<4x1x8x32xf32, #tpu.memory_space<vmem>>, vector<1x1x8x32xf32>
    %1 = vector.shape_cast %0 : vector<1x1x8x32xf32> to vector<8x32xf32>
    %c1 = arith.constant 1 : index
    %c0_3 = arith.constant 0 : index
    %c0_4 = arith.constant 0 : index
    %c0_5 = arith.constant 0 : index
    %2 = vector.load %arg1[%c1, %c0_3, %c0_4, %c0_5] : memref<4x1x8x32xf32, #tpu.memory_space<vmem>>, vector<1x1x8x32xf32>
    %3 = vector.shape_cast %2 : vector<1x1x8x32xf32> to vector<8x32xf32>
    %4 = arith.maximumf %1, %3 : vector<8x32xf32>
    %c2 = arith.constant 2 : index
    %c0_6 = arith.constant 0 : index
    %c0_7 = arith.constant 0 : index
    %c0_8 = arith.constant 0 : index
    %5 = vector.load %arg1[%c2, %c0_6, %c0_7, %c0_8] : memref<4x1x8x32xf32, #tpu.memory_space<vmem>>, vector<1x1x8x32xf32>
    %6 = vector.shape_cast %5 : vector<1x1x8x32xf32> to vector<8x32xf32>
    %c3 = arith.constant 3 : index
    %c0_9 = arith.constant 0 : index
    %c0_10 = arith.constant 0 : index
    %c0_11 = arith.constant 0 : index
    %7 = vector.load %arg1[%c3, %c0_9, %c0_10, %c0_11] : memref<4x1x8x32xf32, #tpu.memory_space<vmem>>, vector<1x1x8x32xf32>
    %8 = vector.shape_cast %7 : vector<1x1x8x32xf32> to vector<8x32xf32>
    %9 = arith.maximumf %6, %8 : vector<8x32xf32>
    %10 = arith.maximumf %4, %9 : vector<8x32xf32>
    %11 = tpu.iota {dimensions = array<i32: 0>} : vector<8x1xi32>
    %c0_i32 = arith.constant 0 : i32
    %12 = vector.broadcast %c0_i32 : i32 to vector<8x1xi32>
    %13 = arith.cmpi sgt, %11, %12 : vector<8x1xi32>
    %c7_i32 = arith.constant 7 : i32
    %14 = vector.broadcast %c7_i32 : i32 to vector<8x1xi32>
    %15 = arith.cmpi slt, %11, %14 : vector<8x1xi32>
    %c1_12 = arith.constant 1 : index
    %c0_13 = arith.constant 0 : index
    %c0_14 = arith.constant 0 : index
    %16 = vector.load %arg2[%c1_12, %c0_13, %c0_14] : memref<3x32x128xf32, #tpu.memory_space<vmem>>, vector<1x32x128xf32>
    %17 = vector.shape_cast %16 : vector<1x32x128xf32> to vector<32x128xf32>
    %cst = arith.constant dense<0.000000e+00> : vector<8x128xf32>
    %18 = tpu.matmul %10, %17, %cst {dimension_numbers = #tpu.dot_dimension_numbers<[1], [0], [0], [1], [0, 0, 1, 1], [], []>} : vector<8x32xf32>, vector<32x128xf32>, vector<8x128xf32> -> vector<8x128xf32>
    %c1_i32 = arith.constant 1 : i32
    %19 = tpu.dynamic_rotate %10 by %c1_i32 dim 0 : vector<8x32xf32>, i32 -> vector<8x32xf32>
    %cst_15 = arith.constant 0.000000e+00 : f32
    %20 = vector.shape_cast %13 : vector<8x1xi1> to vector<8x1xi1>
    %21 = vector.broadcast %20 : vector<8x1xi1> to vector<8x32xi1>
    %22 = vector.broadcast %cst_15 : f32 to vector<8x32xf32>
    %23 = arith.select %21, %19, %22 : vector<8x32xi1>, vector<8x32xf32>
    %c0_16 = arith.constant 0 : index
    %c0_17 = arith.constant 0 : index
    %c0_18 = arith.constant 0 : index
    %24 = vector.load %arg2[%c0_16, %c0_17, %c0_18] : memref<3x32x128xf32, #tpu.memory_space<vmem>>, vector<1x32x128xf32>
    %25 = vector.shape_cast %24 : vector<1x32x128xf32> to vector<32x128xf32>
    %cst_19 = arith.constant dense<0.000000e+00> : vector<8x128xf32>
    %26 = tpu.matmul %23, %25, %cst_19 {dimension_numbers = #tpu.dot_dimension_numbers<[1], [0], [0], [1], [0, 0, 1, 1], [], []>} : vector<8x32xf32>, vector<32x128xf32>, vector<8x128xf32> -> vector<8x128xf32>
    %27 = arith.addf %18, %26 : vector<8x128xf32>
    %c7_i32_20 = arith.constant 7 : i32
    %28 = tpu.dynamic_rotate %10 by %c7_i32_20 dim 0 : vector<8x32xf32>, i32 -> vector<8x32xf32>
    %cst_21 = arith.constant 0.000000e+00 : f32
    %29 = vector.shape_cast %15 : vector<8x1xi1> to vector<8x1xi1>
    %30 = vector.broadcast %29 : vector<8x1xi1> to vector<8x32xi1>
    %31 = vector.broadcast %cst_21 : f32 to vector<8x32xf32>
    %32 = arith.select %30, %28, %31 : vector<8x32xi1>, vector<8x32xf32>
    %c2_22 = arith.constant 2 : index
    %c0_23 = arith.constant 0 : index
    %c0_24 = arith.constant 0 : index
    %33 = vector.load %arg2[%c2_22, %c0_23, %c0_24] : memref<3x32x128xf32, #tpu.memory_space<vmem>>, vector<1x32x128xf32>
    %34 = vector.shape_cast %33 : vector<1x32x128xf32> to vector<32x128xf32>
    %cst_25 = arith.constant dense<0.000000e+00> : vector<8x128xf32>
    %35 = tpu.matmul %32, %34, %cst_25 {dimension_numbers = #tpu.dot_dimension_numbers<[1], [0], [0], [1], [0, 0, 1, 1], [], []>} : vector<8x32xf32>, vector<32x128xf32>, vector<8x128xf32> -> vector<8x128xf32>
    %36 = arith.addf %27, %35 : vector<8x128xf32>
    %c0_26 = arith.constant 0 : index
    %c0_27 = arith.constant 0 : index
    %37 = vector.load %arg3[%c0_26, %c0_27] : memref<1x128xf32, #tpu.memory_space<vmem>>, vector<1x128xf32>
    %38 = vector.broadcast %37 : vector<1x128xf32> to vector<8x128xf32>
    %39 = arith.mulf %36, %38 : vector<8x128xf32>
    %c0_28 = arith.constant 0 : index
    %c0_29 = arith.constant 0 : index
    %40 = vector.load %arg4[%c0_28, %c0_29] : memref<1x128xf32, #tpu.memory_space<vmem>>, vector<1x128xf32>
    %41 = vector.broadcast %40 : vector<1x128xf32> to vector<8x128xf32>
    %42 = arith.addf %39, %41 : vector<8x128xf32>
    %cst_30 = arith.constant 0.000000e+00 : f32
    %43 = vector.broadcast %cst_30 : f32 to vector<8x128xf32>
    %44 = arith.maximumf %42, %43 : vector<8x128xf32>
    %c1_31 = arith.constant 1 : index
    %c0_32 = arith.constant 0 : index
    %c0_33 = arith.constant 0 : index
    %45 = vector.load %arg5[%c1_31, %c0_32, %c0_33] : memref<3x128x128xf32, #tpu.memory_space<vmem>>, vector<1x128x128xf32>
    %46 = vector.shape_cast %45 : vector<1x128x128xf32> to vector<128x128xf32>
    %cst_34 = arith.constant dense<0.000000e+00> : vector<8x128xf32>
    %47 = tpu.matmul %44, %46, %cst_34 {dimension_numbers = #tpu.dot_dimension_numbers<[1], [0], [0], [1], [0, 0, 1, 1], [], []>} : vector<8x128xf32>, vector<128x128xf32>, vector<8x128xf32> -> vector<8x128xf32>
    %c1_i32_35 = arith.constant 1 : i32
    %48 = tpu.dynamic_rotate %44 by %c1_i32_35 dim 0 : vector<8x128xf32>, i32 -> vector<8x128xf32>
    %cst_36 = arith.constant 0.000000e+00 : f32
    %49 = vector.shape_cast %13 : vector<8x1xi1> to vector<8x1xi1>
    %50 = vector.broadcast %49 : vector<8x1xi1> to vector<8x128xi1>
    %51 = vector.broadcast %cst_36 : f32 to vector<8x128xf32>
    %52 = arith.select %50, %48, %51 : vector<8x128xi1>, vector<8x128xf32>
    %c0_37 = arith.constant 0 : index
    %c0_38 = arith.constant 0 : index
    %c0_39 = arith.constant 0 : index
    %53 = vector.load %arg5[%c0_37, %c0_38, %c0_39] : memref<3x128x128xf32, #tpu.memory_space<vmem>>, vector<1x128x128xf32>
    %54 = vector.shape_cast %53 : vector<1x128x128xf32> to vector<128x128xf32>
    %cst_40 = arith.constant dense<0.000000e+00> : vector<8x128xf32>
    %55 = tpu.matmul %52, %54, %cst_40 {dimension_numbers = #tpu.dot_dimension_numbers<[1], [0], [0], [1], [0, 0, 1, 1], [], []>} : vector<8x128xf32>, vector<128x128xf32>, vector<8x128xf32> -> vector<8x128xf32>
    %56 = arith.addf %47, %55 : vector<8x128xf32>
    %c7_i32_41 = arith.constant 7 : i32
    %57 = tpu.dynamic_rotate %44 by %c7_i32_41 dim 0 : vector<8x128xf32>, i32 -> vector<8x128xf32>
    %cst_42 = arith.constant 0.000000e+00 : f32
    %58 = vector.shape_cast %15 : vector<8x1xi1> to vector<8x1xi1>
    %59 = vector.broadcast %58 : vector<8x1xi1> to vector<8x128xi1>
    %60 = vector.broadcast %cst_42 : f32 to vector<8x128xf32>
    %61 = arith.select %59, %57, %60 : vector<8x128xi1>, vector<8x128xf32>
    %c2_43 = arith.constant 2 : index
    %c0_44 = arith.constant 0 : index
    %c0_45 = arith.constant 0 : index
    %62 = vector.load %arg5[%c2_43, %c0_44, %c0_45] : memref<3x128x128xf32, #tpu.memory_space<vmem>>, vector<1x128x128xf32>
    %63 = vector.shape_cast %62 : vector<1x128x128xf32> to vector<128x128xf32>
    %cst_46 = arith.constant dense<0.000000e+00> : vector<8x128xf32>
    %64 = tpu.matmul %61, %63, %cst_46 {dimension_numbers = #tpu.dot_dimension_numbers<[1], [0], [0], [1], [0, 0, 1, 1], [], []>} : vector<8x128xf32>, vector<128x128xf32>, vector<8x128xf32> -> vector<8x128xf32>
    %65 = arith.addf %56, %64 : vector<8x128xf32>
    %c0_47 = arith.constant 0 : index
    %c0_48 = arith.constant 0 : index
    %66 = vector.load %arg6[%c0_47, %c0_48] : memref<1x128xf32, #tpu.memory_space<vmem>>, vector<1x128xf32>
    %67 = vector.broadcast %66 : vector<1x128xf32> to vector<8x128xf32>
    %68 = arith.mulf %65, %67 : vector<8x128xf32>
    %c0_49 = arith.constant 0 : index
    %c0_50 = arith.constant 0 : index
    %69 = vector.load %arg7[%c0_49, %c0_50] : memref<1x128xf32, #tpu.memory_space<vmem>>, vector<1x128xf32>
    %70 = vector.broadcast %69 : vector<1x128xf32> to vector<8x128xf32>
    %71 = arith.addf %68, %70 : vector<8x128xf32>
    %cst_51 = arith.constant 0.000000e+00 : f32
    %72 = vector.broadcast %cst_51 : f32 to vector<8x128xf32>
    %73 = arith.maximumf %71, %72 : vector<8x128xf32>
    %c0_52 = arith.constant 0 : index
    %c0_53 = arith.constant 0 : index
    %c0_54 = arith.constant 0 : index
    %74 = vector.load %arg8[%c0_52, %c0_53, %c0_54] : memref<1x8x128xf32, #tpu.memory_space<vmem>>, vector<1x8x128xf32>
    %75 = vector.shape_cast %74 : vector<1x8x128xf32> to vector<8x128xf32>
    %76 = vector.shape_cast %73 : vector<8x128xf32> to vector<1x8x128xf32>
    tpu.vector_store %arg8[%c0_52, %c0_53, %c0_54], %76 {strides = array<i32>} : memref<1x8x128xf32, #tpu.memory_space<vmem>>, vector<1x8x128xf32>,
    return
  }
  func.func @transform_0(%arg0: i32) -> (i32, i32, i32, i32) {
    %c0_i32 = arith.constant 0 : i32
    %c0_i32_0 = arith.constant 0 : i32
    %c0_i32_1 = arith.constant 0 : i32
    %c0_i32_2 = arith.constant 0 : i32
    return %c0_i32, %arg0, %c0_i32_0, %c0_i32_1 : i32, i32, i32, i32
  }
  func.func @transform_1(%arg0: i32) -> (i32, i32, i32) {
    %c0_i32 = arith.constant 0 : i32
    %c0_i32_0 = arith.constant 0 : i32
    %c0_i32_1 = arith.constant 0 : i32
    %c0_i32_2 = arith.constant 0 : i32
    return %c0_i32, %c0_i32_0, %c0_i32_1 : i32, i32, i32
  }
  func.func @transform_2(%arg0: i32) -> (i32, i32) {
    %c0_i32 = arith.constant 0 : i32
    %c0_i32_0 = arith.constant 0 : i32
    %c0_i32_1 = arith.constant 0 : i32
    return %c0_i32, %c0_i32_0 : i32, i32
  }
  func.func @transform_3(%arg0: i32) -> (i32, i32) {
    %c0_i32 = arith.constant 0 : i32
    %c0_i32_0 = arith.constant 0 : i32
    %c0_i32_1 = arith.constant 0 : i32
    return %c0_i32, %c0_i32_0 : i32, i32
  }
  func.func @transform_4(%arg0: i32) -> (i32, i32, i32) {
    %c0_i32 = arith.constant 0 : i32
    %c0_i32_0 = arith.constant 0 : i32
    %c0_i32_1 = arith.constant 0 : i32
    %c0_i32_2 = arith.constant 0 : i32
    return %c0_i32, %c0_i32_0, %c0_i32_1 : i32, i32, i32
  }
  func.func @transform_5(%arg0: i32) -> (i32, i32) {
    %c0_i32 = arith.constant 0 : i32
    %c0_i32_0 = arith.constant 0 : i32
    %c0_i32_1 = arith.constant 0 : i32
    return %c0_i32, %c0_i32_0 : i32, i32
  }
  func.func @transform_6(%arg0: i32) -> (i32, i32) {
    %c0_i32 = arith.constant 0 : i32
    %c0_i32_0 = arith.constant 0 : i32
    %c0_i32_1 = arith.constant 0 : i32
    return %c0_i32, %c0_i32_0 : i32, i32
  }
  func.func @transform_7(%arg0: i32) -> (i32, i32, i32) {
    %c0_i32 = arith.constant 0 : i32
    %c0_i32_0 = arith.constant 0 : i32
    %c0_i32_1 = arith.constant 0 : i32
    return %arg0, %c0_i32, %c0_i32_0 : i32, i32, i32
  }
}

</mosaic_0001>

<llo_original>
// kernel: down_forward.1
$region0: #{down_forward.1}
  #allocation0 [shape = 'u32[]', space=smem, size = 0x4, offset = 0x4, fixed_abs, tag = 'smem constant byte address 0x4 - core index']
  #allocation1 [shape = 'u32[144,128]{1,0:T(1,128)}', space=vmem, size = 0x12000, scoped, tag = 'internal scratch']
  %s0 = inlined_call_operand.vmem [shape: f32[4,2,8,32], index: 0, kind: input, shape index: {}]
  %s1 = inlined_call_operand.vmem [shape: f32[3,32,128], index: 1, kind: input, shape index: {}]
  %s2 = inlined_call_operand.vmem [shape: f32[1,128], index: 2, kind: input, shape index: {}]
  %s3 = inlined_call_operand.vmem [shape: f32[1,128], index: 3, kind: input, shape index: {}]
  %s4 = inlined_call_operand.vmem [shape: f32[3,128,128], index: 4, kind: input, shape index: {}]
  %s5 = inlined_call_operand.vmem [shape: f32[1,128], index: 5, kind: input, shape index: {}]
  %s6 = inlined_call_operand.vmem [shape: f32[1,128], index: 6, kind: input, shape index: {}]
  %s7 = inlined_call_operand.vmem [shape: f32[2,8,128], index: 7, kind: output, shape index: {}]
  %s8 = sld [smem:[#allocation0]]
  $region99: #{down_forward.1} parent=0
    _
  %s10 = ssub.s32 1, %s8
  %s11 = scalar_select 0, %s10, %s8
  $region1: #{down_forward.1} parent=0
    #allocation2 [shape = 'u8[32768]{0}', space=vmem, size = 0x8000, scoped, tag = 'input window, operand 0']
    loop: start=0, step=1, limit=4
    $region2: #{down_forward.1} parent=1 // loop_pre_header
      _
    $region3: #{down_forward.1} parent=1 // loop_header
      %s13 = sphi 0, %s17
      %p14 = scmp.ge.s32.totalorder %s13, 4
      %s23 = sphi 0, %s25
      %s26 = sphi 0, %s23
      %s27 = sphi 0, %s26
      %s43 = sphi 0, %s27
      %s47 = sphi 0, %s47
      %s49 = sphi 0, %s47
      %s50 = sphi 0, %s49
      %s64 = sphi 0, %s50
      %s68 = sphi 0, %s68
      %s70 = sphi 0, %s68
      %s71 = sphi 0, %s70
      %s85 = sphi 0, %s71
      %s89 = sphi 0, %s89
      %s91 = sphi 0, %s89
      %s92 = sphi 0, %s91
      %s106 = sphi 0, %s92
      %s110 = sphi 0, %s110
      %s112 = sphi 0, %s110
      %s113 = sphi 0, %s112
      %s127 = sphi 0, %s113
      %s131 = sphi 0, %s131
      %s133 = sphi 0, %s131
      %s134 = sphi 0, %s133
      %s148 = sphi 0, %s134
      %s152 = sphi 0, %s152
      %s154 = sphi 0, %s152
      %s155 = sphi 0, %s154
      %s169 = sphi 0, %s155
      %s175 = sphi 0, %s177
      %s178 = sphi 0, %s175
      %s179 = sphi 0, %s178
      %s195 = sphi 0, %s179
    $region4: #{down_forward.1} parent=1 // loop_header_branch
      %16 = sbr.rel (%p14) target = $region8
    $region5: #{down_forward.1} parent=1 // loop_body
      %s18 = ssub.s32 %s13, 1
      %s19 = ssub.s32 %s13, 2
      %s20 = sadd.s32 %s13, 1
      %s21 = ssub.s32 %s13, %s20
      %p22 = scmp.eq.s32.totalorder %s21, 0
      %s24 = sadd.s32 %s23, 1
      %s25 = scalar_select %p22, %s23, %s24
      %p28 = pneg %p22
      %p29 = scmp.eq.s32.totalorder %s13, 1
      %p30 = por %p28, %p29
      %p31 = scmp.ne.s32.totalorder %s23, %s26
      %p32 = scmp.eq.s32.totalorder %s13, 0
      %p33 = por %p31, %p32
      %p34 = scmp.ne.s32.totalorder %s23, %s26
      %p35 = scmp.eq.s32.totalorder %s18, 1
      %p36 = por %p34, %p35
      %p37 = scmp.ne.s32.totalorder %s26, %s27
      %p38 = scmp.eq.s32.totalorder %s18, 0
      %p39 = por %p37, %p38
      %p40 = scmp.ne.s32.totalorder %s26, %s27
      %p41 = scmp.eq.s32.totalorder %s19, 1
      %p42 = por %p40, %p41
      %p44 = scmp.ne.s32.totalorder %s27, %s43
      %p45 = scmp.eq.s32.totalorder %s19, 0
      %p46 = por %p44, %p45
      %s48 = sadd.s32 %s47, 1
      %p51 = scmp.eq.s32.totalorder %s13, 1
      %p52 = scmp.ne.s32.totalorder %s47, %s49
      %p53 = scmp.eq.s32.totalorder %s13, 0
      %p54 = por %p52, %p53
      %p55 = scmp.ne.s32.totalorder %s47, %s49
      %p56 = scmp.eq.s32.totalorder %s18, 1
      %p57 = por %p55, %p56
      %p58 = scmp.ne.s32.totalorder %s49, %s50
      %p59 = scmp.eq.s32.totalorder %s18, 0
      %p60 = por %p58, %p59
      %p61 = scmp.ne.s32.totalorder %s49, %s50
      %p62 = scmp.eq.s32.totalorder %s19, 1
      %p63 = por %p61, %p62
      %p65 = scmp.ne.s32.totalorder %s50, %s64
      %p66 = scmp.eq.s32.totalorder %s19, 0
      %p67 = por %p65, %p66
      %s69 = sadd.s32 %s68, 1
      %p72 = scmp.eq.s32.totalorder %s13, 1
      %p73 = scmp.ne.s32.totalorder %s68, %s70
      %p74 = scmp.eq.s32.totalorder %s13, 0
      %p75 = por %p73, %p74
      %p76 = scmp.ne.s32.totalorder %s68, %s70
      %p77 = scmp.eq.s32.totalorder %s18, 1
      %p78 = por %p76, %p77
      %p79 = scmp.ne.s32.totalorder %s70, %s71
      %p80 = scmp.eq.s32.totalorder %s18, 0
      %p81 = por %p79, %p80
      %p82 = scmp.ne.s32.totalorder %s70, %s71
      %p83 = scmp.eq.s32.totalorder %s19, 1
      %p84 = por %p82, %p83
      %p86 = scmp.ne.s32.totalorder %s71, %s85
      %p87 = scmp.eq.s32.totalorder %s19, 0
      %p88 = por %p86, %p87
      %s90 = sadd.s32 %s89, 1
      %p93 = scmp.eq.s32.totalorder %s13, 1
      %p94 = scmp.ne.s32.totalorder %s89, %s91
      %p95 = scmp.eq.s32.totalorder %s13, 0
      %p96 = por %p94, %p95
      %p97 = scmp.ne.s32.totalorder %s89, %s91
      %p98 = scmp.eq.s32.totalorder %s18, 1
      %p99 = por %p97, %p98
      %p100 = scmp.ne.s32.totalorder %s91, %s92
      %p101 = scmp.eq.s32.totalorder %s18, 0
      %p102 = por %p100, %p101
      %p103 = scmp.ne.s32.totalorder %s91, %s92
      %p104 = scmp.eq.s32.totalorder %s19, 1
      %p105 = por %p103, %p104
      %p107 = scmp.ne.s32.totalorder %s92, %s106
      %p108 = scmp.eq.s32.totalorder %s19, 0
      %p109 = por %p107, %p108
      %s111 = sadd.s32 %s110, 1
      %p114 = scmp.eq.s32.totalorder %s13, 1
      %p115 = scmp.ne.s32.totalorder %s110, %s112
      %p116 = scmp.eq.s32.totalorder %s13, 0
      %p117 = por %p115, %p116
      %p118 = scmp.ne.s32.totalorder %s110, %s112
      %p119 = scmp.eq.s32.totalorder %s18, 1
      %p120 = por %p118, %p119
      %p121 = scmp.ne.s32.totalorder %s112, %s113
      %p122 = scmp.eq.s32.totalorder %s18, 0
      %p123 = por %p121, %p122
      %p124 = scmp.ne.s32.totalorder %s112, %s113
      %p125 = scmp.eq.s32.totalorder %s19, 1
      %p126 = por %p124, %p125
      %p128 = scmp.ne.s32.totalorder %s113, %s127
      %p129 = scmp.eq.s32.totalorder %s19, 0
      %p130 = por %p128, %p129
      %s132 = sadd.s32 %s131, 1
      %p135 = scmp.eq.s32.totalorder %s13, 1
      %p136 = scmp.ne.s32.totalorder %s131, %s133
      %p137 = scmp.eq.s32.totalorder %s13, 0
      %p138 = por %p136, %p137
      %p139 = scmp.ne.s32.totalorder %s131, %s133
      %p140 = scmp.eq.s32.totalorder %s18, 1
      %p141 = por %p139, %p140
      %p142 = scmp.ne.s32.totalorder %s133, %s134
      %p143 = scmp.eq.s32.totalorder %s18, 0
      %p144 = por %p142, %p143
      %p145 = scmp.ne.s32.totalorder %s133, %s134
      %p146 = scmp.eq.s32.totalorder %s19, 1
      %p147 = por %p145, %p146
      %p149 = scmp.ne.s32.totalorder %s134, %s148
      %p150 = scmp.eq.s32.totalorder %s19, 0
      %p151 = por %p149, %p150
      %s153 = sadd.s32 %s152, 1
      %p156 = scmp.eq.s32.totalorder %s13, 1
      %p157 = scmp.ne.s32.totalorder %s152, %s154
      %p158 = scmp.eq.s32.totalorder %s13, 0
      %p159 = por %p157, %p158
      %p160 = scmp.ne.s32.totalorder %s152, %s154
      %p161 = scmp.eq.s32.totalorder %s18, 1
      %p162 = por %p160, %p161
      %p163 = scmp.ne.s32.totalorder %s154, %s155
      %p164 = scmp.eq.s32.totalorder %s18, 0
      %p165 = por %p163, %p164
      %p166 = scmp.ne.s32.totalorder %s154, %s155
      %p167 = scmp.eq.s32.totalorder %s19, 1
      %p168 = por %p166, %p167
      %p170 = scmp.ne.s32.totalorder %s155, %s169
      %p171 = scmp.eq.s32.totalorder %s19, 0
      %p172 = por %p170, %p171
      %s173 = ssub.s32 %s13, %s20
      %p174 = scmp.eq.s32.totalorder %s173, 0
      %s176 = sadd.s32 %s175, 1
      %s177 = scalar_select %p174, %s175, %s176
      %p180 = pneg %p174
      %p181 = scmp.eq.s32.totalorder %s13, 1
      %p182 = por %p180, %p181
      %p183 = scmp.ne.s32.totalorder %s175, %s178
      %p184 = scmp.eq.s32.totalorder %s13, 0
      %p185 = por %p183, %p184
      %p186 = scmp.ne.s32.totalorder %s175, %s178
      %p187 = scmp.eq.s32.totalorder %s18, 1
      %p188 = por %p186, %p187
      %p189 = scmp.ne.s32.totalorder %s178, %s179
      %p190 = scmp.eq.s32.totalorder %s18, 0
      %p191 = por %p189, %p190
      %p192 = scmp.ne.s32.totalorder %s178, %s179
      %p193 = scmp.eq.s32.totalorder %s19, 1
      %p194 = por %p192, %p193
      %p196 = scmp.ne.s32.totalorder %s179, %s195
      %p197 = scmp.eq.s32.totalorder %s19, 0
      %p198 = por %p196, %p197
      %p199 = scmp.le.s32.totalorder 1, %s13
      %p200 = scmp.lt.s32.totalorder %s13, 3
      %p201 = pnand %p199, %p200
      %p202 = pneg %p201
      // Predicated region
      $region9: #{down_forward.1} parent=5 // pred_check
        _
      $region10: #{down_forward.1} parent=5 // pred_check_branch
        %204 = sbr.rel (%p201) target = $region12
      $region11: #{down_forward.1} parent=5 // pred_region
        %s205 = ssub.s32 %s13, 1
        // Predicated region
        $region13: #{down_forward.1} parent=11 // pred_check
          %p206 = pneg %p60
        $region14: #{down_forward.1} parent=11 // pred_check_branch
          %208 = sbr.rel (%p206) target = $region16
        $region15: #{down_forward.1} parent=11 // pred_region
          _
        $region16: #{down_forward.1} parent=11 // pred_fallthru
          _
        // Predicated region
        $region17: #{down_forward.1} parent=11 // pred_check
          %p209 = pneg %p81
        $region18: #{down_forward.1} parent=11 // pred_check_branch
          %211 = sbr.rel (%p209) target = $region20
        $region19: #{down_forward.1} parent=11 // pred_region
          _
        $region20: #{down_forward.1} parent=11 // pred_fallthru
          _
        // Predicated region
        $region21: #{down_forward.1} parent=11 // pred_check
          %p212 = pneg %p102
        $region22: #{down_forward.1} parent=11 // pred_check_branch
          %214 = sbr.rel (%p212) target = $region24
        $region23: #{down_forward.1} parent=11 // pred_region
          _
        $region24: #{down_forward.1} parent=11 // pred_fallthru
          _
        // Predicated region
        $region25: #{down_forward.1} parent=11 // pred_check
          %p215 = pneg %p123
        $region26: #{down_forward.1} parent=11 // pred_check_branch
          %217 = sbr.rel (%p215) target = $region28
        $region27: #{down_forward.1} parent=11 // pred_region
          _
        $region28: #{down_forward.1} parent=11 // pred_fallthru
          _
        // Predicated region
        $region29: #{down_forward.1} parent=11 // pred_check
          %p218 = pneg %p144
        $region30: #{down_forward.1} parent=11 // pred_check_branch
          %220 = sbr.rel (%p218) target = $region32
        $region31: #{down_forward.1} parent=11 // pred_region
          _
        $region32: #{down_forward.1} parent=11 // pred_fallthru
          _
        // Predicated region
        $region33: #{down_forward.1} parent=11 // pred_check
          %p221 = pneg %p165
        $region34: #{down_forward.1} parent=11 // pred_check_branch
          %223 = sbr.rel (%p221) target = $region36
        $region35: #{down_forward.1} parent=11 // pred_region
          _
        $region36: #{down_forward.1} parent=11 // pred_fallthru
          _
      $region12: #{down_forward.1} parent=5 // pred_fallthru
        _
      %p224 = scmp.lt.s32.totalorder %s13, 2
      // Predicated region
      $region37: #{down_forward.1} parent=5 // pred_check
        %p225 = pneg %p224
      $region38: #{down_forward.1} parent=5 // pred_check_branch
        %227 = sbr.rel (%p225) target = $region40
      $region39: #{down_forward.1} parent=5 // pred_region
        // Predicated region
        $region41: #{down_forward.1} parent=39 // pred_check
          %p228 = pneg %p33
        $region42: #{down_forward.1} parent=39 // pred_check_branch
          %230 = sbr.rel (%p228) target = $region44
        $region43: #{down_forward.1} parent=39 // pred_region
          %s231 = sand.u32 %s23, 1
          %s232 = sand.u32 %s23, 1
          %s233 = smul.addr %s232, 32
          %s234 = scalar_lea.vmem [#allocation2], %s233
          %s235 = smul.addr %s13, 8
          %s236 = scalar_lea.vmem %s0, %s235
          // Predicated region
          $region45: #{down_forward.1} parent=43 // pred_check
            _
          $region46: #{down_forward.1} parent=43 // pred_check_branch
            %238 = sbr.rel (0) target = $region48
          $region47: #{down_forward.1} parent=43 // pred_region
            // Predicated region
            $region49: #{down_forward.1} parent=47 // pred_check
              _
            $region50: #{down_forward.1} parent=47 // pred_check_branch
              %240 = sbr.rel (0) target = $region52
            $region51: #{down_forward.1} parent=47 // pred_region
              // Predicated region
              $region64: #{down_forward.1} parent=51 // pred_check
                _
              $region65: #{down_forward.1} parent=51 // pred_check_branch
                %262 = sbr.rel (0) target = $region67
              $region66: #{down_forward.1} parent=51 // pred_region
                loop: start=0, step=1, limit=1
                $region68: #{down_forward.1} parent=66 // loop_pre_header
                  _
                $region69: #{down_forward.1} parent=66 // loop_header
                  %s264 = sphi 0, %s268
                  %p265 = scmp.ge.s32.totalorder %s264, 1
                  %s269 = sphi %s236, %s236
                  %s270 = sphi %s234, %s234
                $region70: #{down_forward.1} parent=66 // loop_header_branch
                  %267 = sbr.rel (%p265) target = $region74
                $region71: #{down_forward.1} parent=66 // loop_body
                  %v271 = vld [vmem:[%s269] sm:$0xff]
                  %272 = vst [vmem:[%s270] sm:$0xff] %v271
                  %v273 = vld [vmem:[%s269 + $0x10] sm:$0xff]
                  %274 = vst [vmem:[%s270 + $0x8] sm:$0xff] %v273
                  %v275 = vld [vmem:[%s269 + $0x20] sm:$0xff]
                  %276 = vst [vmem:[%s270 + $0x10] sm:$0xff] %v275
                  %v277 = vld [vmem:[%s269 + $0x30] sm:$0xff]
                  %278 = vst [vmem:[%s270 + $0x18] sm:$0xff] %v277
                $region72: #{down_forward.1} parent=66 // loop_footer
                  %s268 = sadd.s32 1, %s264
                $region73: #{down_forward.1} parent=66 // loop_footer_branch
                  %263 = sbr.rel target = $region69
                $region74: #{down_forward.1} parent=66 // loop_exit
                  _
              $region67: #{down_forward.1} parent=51 // pred_fallthru
                _
              // Predicated region
              $region75: #{down_forward.1} parent=51 // pred_check
                _
              $region76: #{down_forward.1} parent=51 // pred_check_branch
                %280 = sbr.rel target = $region78
              $region77: #{down_forward.1} parent=51 // pred_region
                _
              $region78: #{down_forward.1} parent=51 // pred_fallthru
                _
            $region52: #{down_forward.1} parent=47 // pred_fallthru
              _
            // Predicated region
            $region53: #{down_forward.1} parent=47 // pred_check
              _
            $region54: #{down_forward.1} parent=47 // pred_check_branch
              %242 = sbr.rel target = $region56
            $region55: #{down_forward.1} parent=47 // pred_region
              %s244 = ssub.s32 256, 1
              loop: start=0, step=1, limit=1
              $region57: #{down_forward.1} parent=55 // loop_pre_header
                _
              $region58: #{down_forward.1} parent=55 // loop_header
                %s246 = sphi 0, %s250
                %p247 = scmp.ge.s32.totalorder %s246, 1
                %s251 = sphi %s236, %s236
                %s252 = sphi %s234, %s234
              $region59: #{down_forward.1} parent=55 // loop_header_branch
                %249 = sbr.rel (%p247) target = $region63
              $region60: #{down_forward.1} parent=55 // loop_body
                %v253 = vld [vmem:[%s251] sm:%s244]
                %254 = vst [vmem:[%s252] sm:%s244] %v253
                %v255 = vld [vmem:[%s251 + $0x10] sm:%s244]
                %256 = vst [vmem:[%s252 + $0x8] sm:%s244] %v255
                %v257 = vld [vmem:[%s251 + $0x20] sm:%s244]
                %258 = vst [vmem:[%s252 + $0x10] sm:%s244] %v257
                %v259 = vld [vmem:[%s251 + $0x30] sm:%s244]
                %260 = vst [vmem:[%s252 + $0x18] sm:%s244] %v259
              $region61: #{down_forward.1} parent=55 // loop_footer
                %s250 = sadd.s32 1, %s246
              $region62: #{down_forward.1} parent=55 // loop_footer_branch
                %245 = sbr.rel target = $region58
              $region63: #{down_forward.1} parent=55 // loop_exit
                _
            $region56: #{down_forward.1} parent=47 // pred_fallthru
              _
          $region48: #{down_forward.1} parent=43 // pred_fallthru
            _
          %281 = vnop
        $region44: #{down_forward.1} parent=39 // pred_fallthru
          _
      $region40: #{down_forward.1} parent=5 // pred_fallthru
        _
      %p282 = scmp.le.s32.totalorder 1, %s13
      %p283 = scmp.lt.s32.totalorder %s13, 3
      %p284 = pnand %p282, %p283
      %p285 = pneg %p284
      // Predicated region
      $region79: #{down_forward.1} parent=5 // pred_check
        _
      $region80: #{down_forward.1} parent=5 // pred_check_branch
        %287 = sbr.rel (%p284) target = $region82
      $region81: #{down_forward.1} parent=5 // pred_region
        %s288 = ssub.s32 %s13, 1
        %s289 = sand.u32 %s26, 1
        %s290 = sand.u32 %s26, 1
        %s291 = smul.addr %s290, 32
        %s292 = scalar_lea.vmem [#allocation2], %s291
        // Predicated region
        $region83: #{down_forward.1} parent=81 // pred_check
          %p293 = pneg %p39
        $region84: #{down_forward.1} parent=81 // pred_check_branch
          %295 = sbr.rel (%p293) target = $region86
        $region85: #{down_forward.1} parent=81 // pred_region
          _
        $region86: #{down_forward.1} parent=81 // pred_fallthru
          _
        %s296 = sand.u32 %s26, 1
        %s297 = sand.u32 %s26, 1
        %s298 = smul.addr %s297, 32
        %s299 = scalar_lea.vmem [#allocation2], %s298
        %p300 = pneg %p39
        %p301 = pneg %p36
        %p302 = pneg %p60
        %p303 = pneg %p57
        %p304 = pneg %p81
        %p305 = pneg %p78
        %p306 = pneg %p102
        %p307 = pneg %p99
        %p308 = pneg %p123
        %p309 = pneg %p120
        %p310 = pneg %p144
        %p311 = pneg %p141
        %p312 = pneg %p165
        %p313 = pneg %p162
        %p314 = pneg %p191
        %p315 = pneg %p188
        %p316 = scmp.lt.s32.totalorder %s18, 1
        %s317 = scalar_select %p316, %s18, 1
        %s318 = smul.addr %s317, 8
        %s319 = scalar_lea.vmem %s7, %s318
        %p320 = scmp.lt.s32.totalorder %s18, 1
        %s321 = scalar_select %p320, %s18, 1
        %s322 = smul.addr %s321, 8
        %s323 = scalar_lea.vmem %s7, %s322
        %v324 = vld [vmem:[%s292] sm:$0xff]
        %s325 = scalar_lea.vmem %s292, 8 [#allocation2]
        %v326 = vld [vmem:[%s325] sm:$0xff]
        %v327 = vmax.f32 %v324, %v326
        %s328 = scalar_lea.vmem %s292, 16 [#allocation2]
        %v329 = vld [vmem:[%s328] sm:$0xff]
        %s330 = scalar_lea.vmem %s292, 24 [#allocation2]
        %v331 = vld [vmem:[%s330] sm:$0xff]
        %v332 = vmax.f32 %v329, %v331
        %v333 = vmax.f32 %v327, %v332
        %v334 = vlaneseq
        %v335 = vshrl.u32 %v334, 7
        %vm336 = vcmp.gt.s32.totalorder %v335, 0
        %vm337 = vcmp.lt.s32.totalorder %v335, 7
        %s338 = scalar_lea.vmem %s1, 32
        %v339 = vld [vmem:[%s338] sm:$0xff]
        %v340 = vld [vmem:[%s338 + $0x8] sm:$0xff]
        %v341 = vld [vmem:[%s338 + $0x10] sm:$0xff]
        %v342 = vld [vmem:[%s338 + $0x18] sm:$0xff]
        %v343 = vrot.slane %v333, 7
        %v344 = vsel %vm336, 1, 0
        %vm345 = vcmp.eq.s32.totalorder %v344, 1
        %v346 = vsel %vm345, %v343, 0.0
        %v347 = vld [vmem:[%s1] sm:$0xff]
        %v348 = vld [vmem:[%s1 + $0x8] sm:$0xff]
        %v349 = vld [vmem:[%s1 + $0x10] sm:$0xff]
        %v350 = vld [vmem:[%s1 + $0x18] sm:$0xff]
        %vm351 = vcmask 261120
        %v353 = vsel %vm351, %v346, 0
        %355 = vmatprep.subr.mxu0 0.0
        %356 = vmatpush1.msra.mxu0 0.0
        %357 = vmatprep.subr.mxu0 0.0
        %358 = vmatpush1.msra.mxu0 0.0
        %359 = vmatprep.subr.mxu0 0.0
        %360 = vmatpush1.msra.mxu0 0.0
        %361 = vmatprep.subr.mxu0 0.0
        %362 = vmatpush1.msra.mxu0 0.0
        %363 = vmatprep.subr.mxu0 0.0
        %364 = vmatpush1.msra.mxu0 0.0
        %365 = vmatprep.subr.mxu0 0.0
        %366 = vmatpush1.msra.mxu0 0.0
        %367 = vmatprep.subr.mxu0 0.0
        %368 = vmatpush1.msra.mxu0 0.0
        %369 = vmatprep.subr.mxu0 0.0
        %370 = vmatpush1.msra.mxu0 0.0
        %371 = vmatprep.subr.mxu0 0.0
        %372 = vmatpush1.msra.mxu0 0.0
        %373 = vmatprep.subr.mxu0 0.0
        %374 = vmatpush1.msra.mxu0 0.0
        %375 = vmatprep.subr.mxu0 0.0
        %376 = vmatpush1.msra.mxu0 0.0
        %377 = vmatprep.subr.mxu0 0.0
        %378 = vmatpush1.msra.mxu0 0.0
        %379 = vmatprep.subr.mxu0 0.0
        %380 = vmatpush1.msra.mxu0 %v350
        %381 = vmatprep.subr.mxu0 0.0
        %382 = vmatpush1.msra.mxu0 %v349
        %383 = vmatprep.subr.mxu0 0.0
        %384 = vmatpush1.msra.mxu0 %v348
        %385 = vmatprep.subr.mxu0 0.0
        %386 = vmatpush1.msra.mxu0 %v347
        %387 = vmatprep.subr.mxu0 0.0
        %388 = vmatpush2.msra.mxu0 0.0
        %389 = vmatprep.subr.mxu0 0.0
        %390 = vmatpush2.msra.mxu0 0.0
        %391 = vmatprep.subr.mxu0 0.0
        %392 = vmatpush2.msra.mxu0 0.0
        %393 = vmatprep.subr.mxu0 0.0
        %394 = vmatpush2.msra.mxu0 0.0
        %395 = vmatprep.subr.mxu0 0.0
        %396 = vmatpush2.msra.mxu0 0.0
        %397 = vmatprep.subr.mxu0 0.0
        %398 = vmatpush2.msra.mxu0 0.0
        %399 = vmatprep.subr.mxu0 0.0
        %400 = vmatpush2.msra.mxu0 0.0
        %401 = vmatprep.subr.mxu0 0.0
        %402 = vmatpush2.msra.mxu0 0.0
        %403 = vmatprep.subr.mxu0 0.0
        %404 = vmatpush2.msra.mxu0 0.0
        %405 = vmatprep.subr.mxu0 0.0
        %406 = vmatpush2.msra.mxu0 0.0
        %407 = vmatprep.subr.mxu0 0.0
        %408 = vmatpush2.msra.mxu0 0.0
        %409 = vmatprep.subr.mxu0 0.0
        %410 = vmatpush2.msra.mxu0 0.0
        %411 = vmatprep.subr.mxu0 0.0
        %412 = vmatpush2.msra.mxu0 0.0
        %413 = vmatprep.subr.mxu0 0.0
        %414 = vmatpush2.msra.mxu0 0.0
        %415 = vmatprep.subr.mxu0 0.0
        %416 = vmatpush2.msra.mxu0 0.0
        %417 = vmatprep.subr.mxu0 0.0
        %418 = vmatpush2.msra.mxu0 0.0
        %419 = vmatprep.mubr.f32.mxu0 0.0
        %420 = vmatmul.mubr.f32.gmra.mxu0 %v353
        %v421 = vpop.f32.mrf.mxu0
        %v422 = vadd.f32 0.0, %v421
        %v423 = vpop.f32.mrf.mxu0
        %424 = vdwg.mxu0
        %v426 = vsel %vm351, %v333, 0
        %428 = vmatprep.subr.mxu0 0.0
        %429 = vmatpush1.msra.mxu0 0.0
        %430 = vmatprep.subr.mxu0 0.0
        %431 = vmatpush1.msra.mxu0 0.0
        %432 = vmatprep.subr.mxu0 0.0
        %433 = vmatpush1.msra.mxu0 0.0
        %434 = vmatprep.subr.mxu0 0.0
        %435 = vmatpush1.msra.mxu0 0.0
        %436 = vmatprep.subr.mxu0 0.0
        %437 = vmatpush1.msra.mxu0 0.0
        %438 = vmatprep.subr.mxu0 0.0
        %439 = vmatpush1.msra.mxu0 0.0
        %440 = vmatprep.subr.mxu0 0.0
        %441 = vmatpush1.msra.mxu0 0.0
        %442 = vmatprep.subr.mxu0 0.0
        %443 = vmatpush1.msra.mxu0 0.0
        %444 = vmatprep.subr.mxu0 0.0
        %445 = vmatpush1.msra.mxu0 0.0
        %446 = vmatprep.subr.mxu0 0.0
        %447 = vmatpush1.msra.mxu0 0.0
        %448 = vmatprep.subr.mxu0 0.0
        %449 = vmatpush1.msra.mxu0 0.0
        %450 = vmatprep.subr.mxu0 0.0
        %451 = vmatpush1.msra.mxu0 0.0
        %452 = vmatprep.subr.mxu0 0.0
        %453 = vmatpush1.msra.mxu0 %v342
        %454 = vmatprep.subr.mxu0 0.0
        %455 = vmatpush1.msra.mxu0 %v341
        %456 = vmatprep.subr.mxu0 0.0
        %457 = vmatpush1.msra.mxu0 %v340
        %458 = vmatprep.subr.mxu0 0.0
        %459 = vmatpush1.msra.mxu0 %v339
        %460 = vmatprep.subr.mxu0 0.0
        %461 = vmatpush2.msra.mxu0 0.0
        %462 = vmatprep.subr.mxu0 0.0
        %463 = vmatpush2.msra.mxu0 0.0
        %464 = vmatprep.subr.mxu0 0.0
        %465 = vmatpush2.msra.mxu0 0.0
        %466 = vmatprep.subr.mxu0 0.0
        %467 = vmatpush2.msra.mxu0 0.0
        %468 = vmatprep.subr.mxu0 0.0
        %469 = vmatpush2.msra.mxu0 0.0
        %470 = vmatprep.subr.mxu0 0.0
        %471 = vmatpush2.msra.mxu0 0.0
        %472 = vmatprep.subr.mxu0 0.0
        %473 = vmatpush2.msra.mxu0 0.0
        %474 = vmatprep.subr.mxu0 0.0
        %475 = vmatpush2.msra.mxu0 0.0
        %476 = vmatprep.subr.mxu0 0.0
        %477 = vmatpush2.msra.mxu0 0.0
        %478 = vmatprep.subr.mxu0 0.0
        %479 = vmatpush2.msra.mxu0 0.0
        %480 = vmatprep.subr.mxu0 0.0
        %481 = vmatpush2.msra.mxu0 0.0
        %482 = vmatprep.subr.mxu0 0.0
        %483 = vmatpush2.msra.mxu0 0.0
        %484 = vmatprep.subr.mxu0 0.0
        %485 = vmatpush2.msra.mxu0 0.0
        %486 = vmatprep.subr.mxu0 0.0
        %487 = vmatpush2.msra.mxu0 0.0
        %488 = vmatprep.subr.mxu0 0.0
        %489 = vmatpush2.msra.mxu0 0.0
        %490 = vmatprep.subr.mxu0 0.0
        %491 = vmatpush2.msra.mxu0 0.0
        %492 = vmatprep.mubr.f32.mxu0 0.0
        %493 = vmatmul.mubr.f32.gmra.mxu0 %v426
        %v494 = vpop.f32.mrf.mxu0
        %v495 = vadd.f32 %v422, %v494
        %v496 = vpop.f32.mrf.mxu0
        %497 = vdwg.mxu0
        %v498 = vrot.slane %v333, 1
        %v499 = vsel %vm337, 1, 0
        %vm500 = vcmp.eq.s32.totalorder %v499, 1
        %v501 = vsel %vm500, %v498, 0.0
        %s502 = scalar_lea.vmem %s1, 64
        %v503 = vld [vmem:[%s502] sm:$0xff]
        %v504 = vld [vmem:[%s502 + $0x8] sm:$0xff]
        %v505 = vld [vmem:[%s502 + $0x10] sm:$0xff]
        %v506 = vld [vmem:[%s502 + $0x18] sm:$0xff]
        %v508 = vsel %vm351, %v501, 0
        %510 = vmatprep.subr.mxu0 0.0
        %511 = vmatpush1.msra.mxu0 0.0
        %512 = vmatprep.subr.mxu0 0.0
        %513 = vmatpush1.msra.mxu0 0.0
        %514 = vmatprep.subr.mxu0 0.0
        %515 = vmatpush1.msra.mxu0 0.0
        %516 = vmatprep.subr.mxu0 0.0
        %517 = vmatpush1.msra.mxu0 0.0
        %518 = vmatprep.subr.mxu0 0.0
        %519 = vmatpush1.msra.mxu0 0.0
        %520 = vmatprep.subr.mxu0 0.0
        %521 = vmatpush1.msra.mxu0 0.0
        %522 = vmatprep.subr.mxu0 0.0
        %523 = vmatpush1.msra.mxu0 0.0
        %524 = vmatprep.subr.mxu0 0.0
        %525 = vmatpush1.msra.mxu0 0.0
        %526 = vmatprep.subr.mxu0 0.0
        %527 = vmatpush1.msra.mxu0 0.0
        %528 = vmatprep.subr.mxu0 0.0
        %529 = vmatpush1.msra.mxu0 0.0
        %530 = vmatprep.subr.mxu0 0.0
        %531 = vmatpush1.msra.mxu0 0.0
        %532 = vmatprep.subr.mxu0 0.0
        %533 = vmatpush1.msra.mxu0 0.0
        %534 = vmatprep.subr.mxu0 0.0
        %535 = vmatpush1.msra.mxu0 %v506
        %536 = vmatprep.subr.mxu0 0.0
        %537 = vmatpush1.msra.mxu0 %v505
        %538 = vmatprep.subr.mxu0 0.0
        %539 = vmatpush1.msra.mxu0 %v504
        %540 = vmatprep.subr.mxu0 0.0
        %541 = vmatpush1.msra.mxu0 %v503
        %542 = vmatprep.subr.mxu0 0.0
        %543 = vmatpush2.msra.mxu0 0.0
        %544 = vmatprep.subr.mxu0 0.0
        %545 = vmatpush2.msra.mxu0 0.0
        %546 = vmatprep.subr.mxu0 0.0
        %547 = vmatpush2.msra.mxu0 0.0
        %548 = vmatprep.subr.mxu0 0.0
        %549 = vmatpush2.msra.mxu0 0.0
        %550 = vmatprep.subr.mxu0 0.0
        %551 = vmatpush2.msra.mxu0 0.0
        %552 = vmatprep.subr.mxu0 0.0
        %553 = vmatpush2.msra.mxu0 0.0
        %554 = vmatprep.subr.mxu0 0.0
        %555 = vmatpush2.msra.mxu0 0.0
        %556 = vmatprep.subr.mxu0 0.0
        %557 = vmatpush2.msra.mxu0 0.0
        %558 = vmatprep.subr.mxu0 0.0
        %559 = vmatpush2.msra.mxu0 0.0
        %560 = vmatprep.subr.mxu0 0.0
        %561 = vmatpush2.msra.mxu0 0.0
        %562 = vmatprep.subr.mxu0 0.0
        %563 = vmatpush2.msra.mxu0 0.0
        %564 = vmatprep.subr.mxu0 0.0
        %565 = vmatpush2.msra.mxu0 0.0
        %566 = vmatprep.subr.mxu0 0.0
        %567 = vmatpush2.msra.mxu0 0.0
        %568 = vmatprep.subr.mxu0 0.0
        %569 = vmatpush2.msra.mxu0 0.0
        %570 = vmatprep.subr.mxu0 0.0
        %571 = vmatpush2.msra.mxu0 0.0
        %572 = vmatprep.subr.mxu0 0.0
        %573 = vmatpush2.msra.mxu0 0.0
        %574 = vmatprep.mubr.f32.mxu0 0.0
        %575 = vmatmul.mubr.f32.gmra.mxu0 %v508
        %v576 = vpop.f32.mrf.mxu0
        %v577 = vadd.f32 0.0, %v576
        %v578 = vpop.f32.mrf.mxu0
        %579 = vdwg.mxu0
        %v580 = vadd.f32 %v495, %v577
        %v581 = vld [vmem:[%s2] sm:$0x1]
        %v583 = vlaneseq
        %v584 = vshrl.u32 %v583, 7
        %v585 = vsub.s32 0, %v584
        %v586 = vrot.slane %v581, %v585
        %v588 = vmul.f32 %v580, %v586
        %v589 = vld [vmem:[%s3] sm:$0x1]
        %v591 = vlaneseq
        %v592 = vshrl.u32 %v591, 7
        %v593 = vsub.s32 0, %v592
        %v594 = vrot.slane %v589, %v593
        %v596 = vadd.f32 %v588, %v594
        %v597 = vmax.f32 %v596, 0.0
        %s598 = scalar_lea.vmem %s4, 128
        %v599 = vld [vmem:[%s598] sm:$0xff]
        %v600 = vld [vmem:[%s598 + $0x8] sm:$0xff]
        %v601 = vld [vmem:[%s598 + $0x10] sm:$0xff]
        %v602 = vld [vmem:[%s598 + $0x18] sm:$0xff]
        %v603 = vld [vmem:[%s598 + $0x20] sm:$0xff]
        %v604 = vld [vmem:[%s598 + $0x28] sm:$0xff]
        %v605 = vld [vmem:[%s598 + $0x30] sm:$0xff]
        %v606 = vld [vmem:[%s598 + $0x38] sm:$0xff]
        %v607 = vld [vmem:[%s598 + $0x40] sm:$0xff]
        %v608 = vld [vmem:[%s598 + $0x48] sm:$0xff]
        %v609 = vld [vmem:[%s598 + $0x50] sm:$0xff]
        %v610 = vld [vmem:[%s598 + $0x58] sm:$0xff]
        %v611 = vld [vmem:[%s598 + $0x60] sm:$0xff]
        %v612 = vld [vmem:[%s598 + $0x68] sm:$0xff]
        %v613 = vld [vmem:[%s598 + $0x70] sm:$0xff]
        %v614 = vld [vmem:[%s598 + $0x78] sm:$0xff]
        %v615 = vrot.slane %v597, 7
        %v616 = vsel %vm345, %v615, 0.0
        %v617 = vld [vmem:[%s4] sm:$0xff]
        %v618 = vld [vmem:[%s4 + $0x8] sm:$0xff]
        %v619 = vld [vmem:[%s4 + $0x10] sm:$0xff]
        %v620 = vld [vmem:[%s4 + $0x18] sm:$0xff]
        %v621 = vld [vmem:[%s4 + $0x20] sm:$0xff]
        %v622 = vld [vmem:[%s4 + $0x28] sm:$0xff]
        %v623 = vld [vmem:[%s4 + $0x30] sm:$0xff]
        %v624 = vld [vmem:[%s4 + $0x38] sm:$0xff]
        %v625 = vld [vmem:[%s4 + $0x40] sm:$0xff]
        %v626 = vld [vmem:[%s4 + $0x48] sm:$0xff]
        %v627 = vld [vmem:[%s4 + $0x50] sm:$0xff]
        %v628 = vld [vmem:[%s4 + $0x58] sm:$0xff]
        %v629 = vld [vmem:[%s4 + $0x60] sm:$0xff]
        %v630 = vld [vmem:[%s4 + $0x68] sm:$0xff]
        %v631 = vld [vmem:[%s4 + $0x70] sm:$0xff]
        %v632 = vld [vmem:[%s4 + $0x78] sm:$0xff]
        %633 = vmatprep.subr.mxu0 0.0
        %634 = vmatpush1.msra.mxu0 %v632
        %635 = vmatprep.subr.mxu0 0.0
        %636 = vmatpush1.msra.mxu0 %v631
        %637 = vmatprep.subr.mxu0 0.0
        %638 = vmatpush1.msra.mxu0 %v630
        %639 = vmatprep.subr.mxu0 0.0
        %640 = vmatpush1.msra.mxu0 %v629
        %641 = vmatprep.subr.mxu0 0.0
        %642 = vmatpush1.msra.mxu0 %v628
        %643 = vmatprep.subr.mxu0 0.0
        %644 = vmatpush1.msra.mxu0 %v627
        %645 = vmatprep.subr.mxu0 0.0
        %646 = vmatpush1.msra.mxu0 %v626
        %647 = vmatprep.subr.mxu0 0.0
        %648 = vmatpush1.msra.mxu0 %v625
        %649 = vmatprep.subr.mxu0 0.0
        %650 = vmatpush1.msra.mxu0 %v624
        %651 = vmatprep.subr.mxu0 0.0
        %652 = vmatpush1.msra.mxu0 %v623
        %653 = vmatprep.subr.mxu0 0.0
        %654 = vmatpush1.msra.mxu0 %v622
        %655 = vmatprep.subr.mxu0 0.0
        %656 = vmatpush1.msra.mxu0 %v621
        %657 = vmatprep.subr.mxu0 0.0
        %658 = vmatpush1.msra.mxu0 %v620
        %659 = vmatprep.subr.mxu0 0.0
        %660 = vmatpush1.msra.mxu0 %v619
        %661 = vmatprep.subr.mxu0 0.0
        %662 = vmatpush1.msra.mxu0 %v618
        %663 = vmatprep.subr.mxu0 0.0
        %664 = vmatpush1.msra.mxu0 %v617
        %665 = vmatprep.subr.mxu0 0.0
        %666 = vmatpush2.msra.mxu0 0.0
        %667 = vmatprep.subr.mxu0 0.0
        %668 = vmatpush2.msra.mxu0 0.0
        %669 = vmatprep.subr.mxu0 0.0
        %670 = vmatpush2.msra.mxu0 0.0
        %671 = vmatprep.subr.mxu0 0.0
        %672 = vmatpush2.msra.mxu0 0.0
        %673 = vmatprep.subr.mxu0 0.0
        %674 = vmatpush2.msra.mxu0 0.0
        %675 = vmatprep.subr.mxu0 0.0
        %676 = vmatpush2.msra.mxu0 0.0
        %677 = vmatprep.subr.mxu0 0.0
        %678 = vmatpush2.msra.mxu0 0.0
        %679 = vmatprep.subr.mxu0 0.0
        %680 = vmatpush2.msra.mxu0 0.0
        %681 = vmatprep.subr.mxu0 0.0
        %682 = vmatpush2.msra.mxu0 0.0
        %683 = vmatprep.subr.mxu0 0.0
        %684 = vmatpush2.msra.mxu0 0.0
        %685 = vmatprep.subr.mxu0 0.0
        %686 = vmatpush2.msra.mxu0 0.0
        %687 = vmatprep.subr.mxu0 0.0
        %688 = vmatpush2.msra.mxu0 0.0
        %689 = vmatprep.subr.mxu0 0.0
        %690 = vmatpush2.msra.mxu0 0.0
        %691 = vmatprep.subr.mxu0 0.0
        %692 = vmatpush2.msra.mxu0 0.0
        %693 = vmatprep.subr.mxu0 0.0
        %694 = vmatpush2.msra.mxu0 0.0
        %695 = vmatprep.subr.mxu0 0.0
        %696 = vmatpush2.msra.mxu0 0.0
        %697 = vmatprep.mubr.f32.mxu0 0.0
        %698 = vmatmul.mubr.f32.gmra.mxu0 %v616
        %v699 = vpop.f32.mrf.mxu0
        %v700 = vadd.f32 0.0, %v699
        %v701 = vpop.f32.mrf.mxu0
        %702 = vdwg.mxu0
        %703 = vmatprep.subr.mxu0 0.0
        %704 = vmatpush1.msra.mxu0 %v614
        %705 = vmatprep.subr.mxu0 0.0
        %706 = vmatpush1.msra.mxu0 %v613
        %707 = vmatprep.subr.mxu0 0.0
        %708 = vmatpush1.msra.mxu0 %v612
        %709 = vmatprep.subr.mxu0 0.0
        %710 = vmatpush1.msra.mxu0 %v611
        %711 = vmatprep.subr.mxu0 0.0
        %712 = vmatpush1.msra.mxu0 %v610
        %713 = vmatprep.subr.mxu0 0.0
        %714 = vmatpush1.msra.mxu0 %v609
        %715 = vmatprep.subr.mxu0 0.0
        %716 = vmatpush1.msra.mxu0 %v608
        %717 = vmatprep.subr.mxu0 0.0
        %718 = vmatpush1.msra.mxu0 %v607
        %719 = vmatprep.subr.mxu0 0.0
        %720 = vmatpush1.msra.mxu0 %v606
        %721 = vmatprep.subr.mxu0 0.0
        %722 = vmatpush1.msra.mxu0 %v605
        %723 = vmatprep.subr.mxu0 0.0
        %724 = vmatpush1.msra.mxu0 %v604
        %725 = vmatprep.subr.mxu0 0.0
        %726 = vmatpush1.msra.mxu0 %v603
        %727 = vmatprep.subr.mxu0 0.0
        %728 = vmatpush1.msra.mxu0 %v602
        %729 = vmatprep.subr.mxu0 0.0
        %730 = vmatpush1.msra.mxu0 %v601
        %731 = vmatprep.subr.mxu0 0.0
        %732 = vmatpush1.msra.mxu0 %v600
        %733 = vmatprep.subr.mxu0 0.0
        %734 = vmatpush1.msra.mxu0 %v599
        %735 = vmatprep.subr.mxu0 0.0
        %736 = vmatpush2.msra.mxu0 0.0
        %737 = vmatprep.subr.mxu0 0.0
        %738 = vmatpush2.msra.mxu0 0.0
        %739 = vmatprep.subr.mxu0 0.0
        %740 = vmatpush2.msra.mxu0 0.0
        %741 = vmatprep.subr.mxu0 0.0
        %742 = vmatpush2.msra.mxu0 0.0
        %743 = vmatprep.subr.mxu0 0.0
        %744 = vmatpush2.msra.mxu0 0.0
        %745 = vmatprep.subr.mxu0 0.0
        %746 = vmatpush2.msra.mxu0 0.0
        %747 = vmatprep.subr.mxu0 0.0
        %748 = vmatpush2.msra.mxu0 0.0
        %749 = vmatprep.subr.mxu0 0.0
        %750 = vmatpush2.msra.mxu0 0.0
        %751 = vmatprep.subr.mxu0 0.0
        %752 = vmatpush2.msra.mxu0 0.0
        %753 = vmatprep.subr.mxu0 0.0
        %754 = vmatpush2.msra.mxu0 0.0
        %755 = vmatprep.subr.mxu0 0.0
        %756 = vmatpush2.msra.mxu0 0.0
        %757 = vmatprep.subr.mxu0 0.0
        %758 = vmatpush2.msra.mxu0 0.0
        %759 = vmatprep.subr.mxu0 0.0
        %760 = vmatpush2.msra.mxu0 0.0
        %761 = vmatprep.subr.mxu0 0.0
        %762 = vmatpush2.msra.mxu0 0.0
        %763 = vmatprep.subr.mxu0 0.0
        %764 = vmatpush2.msra.mxu0 0.0
        %765 = vmatprep.subr.mxu0 0.0
        %766 = vmatpush2.msra.mxu0 0.0
        %767 = vmatprep.mubr.f32.mxu0 0.0
        %768 = vmatmul.mubr.f32.gmra.mxu0 %v597
        %v769 = vpop.f32.mrf.mxu0
        %v770 = vadd.f32 %v700, %v769
        %v771 = vpop.f32.mrf.mxu0
        %772 = vdwg.mxu0
        %v773 = vrot.slane %v597, 1
        %v774 = vsel %vm500, %v773, 0.0
        %s775 = scalar_lea.vmem %s4, 256
        %v776 = vld [vmem:[%s775] sm:$0xff]
        %v777 = vld [vmem:[%s775 + $0x8] sm:$0xff]
        %v778 = vld [vmem:[%s775 + $0x10] sm:$0xff]
        %v779 = vld [vmem:[%s775 + $0x18] sm:$0xff]
        %v780 = vld [vmem:[%s775 + $0x20] sm:$0xff]
        %v781 = vld [vmem:[%s775 + $0x28] sm:$0xff]
        %v782 = vld [vmem:[%s775 + $0x30] sm:$0xff]
        %v783 = vld [vmem:[%s775 + $0x38] sm:$0xff]
        %v784 = vld [vmem:[%s775 + $0x40] sm:$0xff]
        %v785 = vld [vmem:[%s775 + $0x48] sm:$0xff]
        %v786 = vld [vmem:[%s775 + $0x50] sm:$0xff]
        %v787 = vld [vmem:[%s775 + $0x58] sm:$0xff]
        %v788 = vld [vmem:[%s775 + $0x60] sm:$0xff]
        %v789 = vld [vmem:[%s775 + $0x68] sm:$0xff]
        %v790 = vld [vmem:[%s775 + $0x70] sm:$0xff]
        %v791 = vld [vmem:[%s775 + $0x78] sm:$0xff]
        %792 = vmatprep.subr.mxu0 0.0
        %793 = vmatpush1.msra.mxu0 %v791
        %794 = vmatprep.subr.mxu0 0.0
        %795 = vmatpush1.msra.mxu0 %v790
        %796 = vmatprep.subr.mxu0 0.0
        %797 = vmatpush1.msra.mxu0 %v789
        %798 = vmatprep.subr.mxu0 0.0
        %799 = vmatpush1.msra.mxu0 %v788
        %800 = vmatprep.subr.mxu0 0.0
        %801 = vmatpush1.msra.mxu0 %v787
        %802 = vmatprep.subr.mxu0 0.0
        %803 = vmatpush1.msra.mxu0 %v786
        %804 = vmatprep.subr.mxu0 0.0
        %805 = vmatpush1.msra.mxu0 %v785
        %806 = vmatprep.subr.mxu0 0.0
        %807 = vmatpush1.msra.mxu0 %v784
        %808 = vmatprep.subr.mxu0 0.0
        %809 = vmatpush1.msra.mxu0 %v783
        %810 = vmatprep.subr.mxu0 0.0
        %811 = vmatpush1.msra.mxu0 %v782
        %812 = vmatprep.subr.mxu0 0.0
        %813 = vmatpush1.msra.mxu0 %v781
        %814 = vmatprep.subr.mxu0 0.0
        %815 = vmatpush1.msra.mxu0 %v780
        %816 = vmatprep.subr.mxu0 0.0
        %817 = vmatpush1.msra.mxu0 %v779
        %818 = vmatprep.subr.mxu0 0.0
        %819 = vmatpush1.msra.mxu0 %v778
        %820 = vmatprep.subr.mxu0 0.0
        %821 = vmatpush1.msra.mxu0 %v777
        %822 = vmatprep.subr.mxu0 0.0
        %823 = vmatpush1.msra.mxu0 %v776
        %824 = vmatprep.subr.mxu0 0.0
        %825 = vmatpush2.msra.mxu0 0.0
        %826 = vmatprep.subr.mxu0 0.0
        %827 = vmatpush2.msra.mxu0 0.0
        %828 = vmatprep.subr.mxu0 0.0
        %829 = vmatpush2.msra.mxu0 0.0
        %830 = vmatprep.subr.mxu0 0.0
        %831 = vmatpush2.msra.mxu0 0.0
        %832 = vmatprep.subr.mxu0 0.0
        %833 = vmatpush2.msra.mxu0 0.0
        %834 = vmatprep.subr.mxu0 0.0
        %835 = vmatpush2.msra.mxu0 0.0
        %836 = vmatprep.subr.mxu0 0.0
        %837 = vmatpush2.msra.mxu0 0.0
        %838 = vmatprep.subr.mxu0 0.0
        %839 = vmatpush2.msra.mxu0 0.0
        %840 = vmatprep.subr.mxu0 0.0
        %841 = vmatpush2.msra.mxu0 0.0
        %842 = vmatprep.subr.mxu0 0.0
        %843 = vmatpush2.msra.mxu0 0.0
        %844 = vmatprep.subr.mxu0 0.0
        %845 = vmatpush2.msra.mxu0 0.0
        %846 = vmatprep.subr.mxu0 0.0
        %847 = vmatpush2.msra.mxu0 0.0
        %848 = vmatprep.subr.mxu0 0.0
        %849 = vmatpush2.msra.mxu0 0.0
        %850 = vmatprep.subr.mxu0 0.0
        %851 = vmatpush2.msra.mxu0 0.0
        %852 = vmatprep.subr.mxu0 0.0
        %853 = vmatpush2.msra.mxu0 0.0
        %854 = vmatprep.subr.mxu0 0.0
        %855 = vmatpush2.msra.mxu0 0.0
        %856 = vmatprep.mubr.f32.mxu0 0.0
        %857 = vmatmul.mubr.f32.gmra.mxu0 %v774
        %v858 = vpop.f32.mrf.mxu0
        %v859 = vadd.f32 0.0, %v858
        %v860 = vpop.f32.mrf.mxu0
        %861 = vdwg.mxu0
        %v862 = vadd.f32 %v770, %v859
        %v863 = vld [vmem:[%s5] sm:$0x1]
        %v865 = vlaneseq
        %v866 = vshrl.u32 %v865, 7
        %v867 = vsub.s32 0, %v866
        %v868 = vrot.slane %v863, %v867
        %v870 = vmul.f32 %v862, %v868
        %v871 = vld [vmem:[%s6] sm:$0x1]
        %v873 = vlaneseq
        %v874 = vshrl.u32 %v873, 7
        %v875 = vsub.s32 0, %v874
        %v876 = vrot.slane %v871, %v875
        %v878 = vadd.f32 %v870, %v876
        %v879 = vmax.f32 %v878, 0.0
        %880 = vst [vmem:[%s323] sm:$0xff] %v879
        %p881 = scmp.lt.s32.totalorder %s18, 1
        %s882 = scalar_select %p881, %s18, 1
        %s883 = smul.addr %s882, 8
        %s884 = scalar_lea.vmem %s7, %s883
        // Predicated region
        $region87: #{down_forward.1} parent=81 // pred_check
          %p885 = pneg %p188
        $region88: #{down_forward.1} parent=81 // pred_check_branch
          %887 = sbr.rel (%p885) target = $region90
        $region89: #{down_forward.1} parent=81 // pred_region
          _
        $region90: #{down_forward.1} parent=81 // pred_fallthru
          _
      $region82: #{down_forward.1} parent=5 // pred_fallthru
        _
      %p888 = scmp.le.s32.totalorder 2, %s13
      // Predicated region
      $region91: #{down_forward.1} parent=5 // pred_check
        %p889 = pneg %p888
      $region92: #{down_forward.1} parent=5 // pred_check_branch
        %891 = sbr.rel (%p889) target = $region94
      $region93: #{down_forward.1} parent=5 // pred_region
        %s892 = ssub.s32 %s13, 2
        // Predicated region
        $region95: #{down_forward.1} parent=93 // pred_check
          %p893 = pneg %p194
        $region96: #{down_forward.1} parent=93 // pred_check_branch
          %895 = sbr.rel (%p893) target = $region98
        $region97: #{down_forward.1} parent=93 // pred_region
          %p896 = scmp.lt.s32.totalorder %s19, 1
          %s897 = scalar_select %p896, %s19, 1
          %s898 = smul.addr %s897, 8
          %s899 = scalar_lea.vmem %s7, %s898
        $region98: #{down_forward.1} parent=93 // pred_fallthru
          _
      $region94: #{down_forward.1} parent=5 // pred_fallthru
        _
    $region6: #{down_forward.1} parent=1 // loop_footer
      %s17 = sadd.s32 1, %s13
    $region7: #{down_forward.1} parent=1 // loop_footer_branch
      %12 = sbr.rel target = $region3
    $region8: #{down_forward.1} parent=1 // loop_exit
      _

</llo_original>
